<compile_context>
chip_gen: v7x
topology: tpu7x:2x2x1
jax: 0.10.0
libtpu: 0.0.40
codegen_flags: <defaults>
</compile_context>

<pallas_src>
import jax
import jax.numpy as jnp
from jax.experimental import pallas as pl
from jax.experimental.pallas import tpu as pltpu


def _round_up(n, m):
    return ((n + m - 1) // m) * m


def _linear_relu_kernel(x_ref, w1_ref, b1_ref, w2_ref, b2_ref, o_ref):
    """Fused tanh(relu(x @ W1 + b1) @ W2 + b2); batch on lanes, hidden on sublanes.

    x_ref : [2, TB]     row 0 = position, row 1 = velocity (batch on lanes)
    w1_ref: [LP, 128]   lane 0 = W1[0, :], lane 1 = W1[1, :]; padded rows are 0
    b1_ref: [LP, 128]   lane 0 = b1; padded rows are 0
    w2_ref: [LP, 128]   lane 0 = W2[:, 0]; padded rows are 0
    b2_ref: [1, 128]    lane 0 = b2
    o_ref : [1, TB]     lane-dense output row (one lane per batch element)
    """
    x0 = x_ref[0:1, :]                      # [1, TB]
    x1 = x_ref[1:2, :]                      # [1, TB]

    # Layer 1 (2 -> L): two broadcast multiply-adds on the VPU.
    h = (w1_ref[:, 0:1] * x0
         + w1_ref[:, 1:2] * x1
         + b1_ref[:, 0:1])                  # [LP, TB]
    h = jnp.maximum(h, 0.0)                 # ReLU (VPU); padded rows stay 0

    # Layer 2 (L -> 1): VPU multiply + XLU sublane reduction.  Padded rows of
    # both h (relu(0)=0) and w2 (0) contribute nothing to the sum.
    acc = jnp.sum(h * w2_ref[:, 0:1], axis=0, keepdims=True)   # [1, TB]

    # Bias + tanh (EUP); single lane-dense store.
    o_ref[...] = jnp.tanh(acc + b2_ref[:, 0:1]).astype(o_ref.dtype)


def linear_relu_forward(x, params, *, batch_tile=512):
    """Run the fused LinearReLU kernel.

    x:      [batch, 2] float32
    params: dict with w1 [2, l], b1 [l], w2 [l, 1], b2 [1]
            (weights stored [in, out], i.e. transpose of PyTorch's [out, in])
    returns [batch, 1] float32
    """
    batch, in_features = x.shape
    assert in_features == 2, "mountain-car state is (position, velocity)"
    L = params["w1"].shape[1]
    LP = _round_up(max(L, 1), 8)            # hidden padded to sublane multiple

    # ---- host-side packing into vreg-friendly tiles (zero padding) ----------
    w1 = params["w1"].astype(jnp.float32)                       # [2, L]
    w1p = (jnp.zeros((LP, 128), jnp.float32)
           .at[:L, 0].set(w1[0, :])
           .at[:L, 1].set(w1[1, :]))
    b1p = (jnp.zeros((LP, 128), jnp.float32)
           .at[:L, 0].set(jnp.reshape(params["b1"], (L,)).astype(jnp.float32)))
    w2p = (jnp.zeros((LP, 128), jnp.float32)
           .at[:L, 0].set(jnp.reshape(params["w2"], (L,)).astype(jnp.float32)))
    b2p = (jnp.zeros((1, 128), jnp.float32)
           .at[0, 0].set(jnp.reshape(params["b2"], ()).astype(jnp.float32)))

    # ---- batch tiling: lane axis => multiples of 128, batch padded to tile --
    tb = _round_up(min(batch_tile, _round_up(batch, 128)), 128)
    b_pad = _round_up(batch, tb)
    # x transposed so batch sits on lanes; padded lanes are zero (sliced off).
    xt = (jnp.zeros((2, b_pad), jnp.float32)
          .at[:, :batch].set(x.astype(jnp.float32).T))

    grid = (b_pad // tb,)

    out_padded = pl.pallas_call(
        _linear_relu_kernel,
        out_shape=jax.ShapeDtypeStruct((1, b_pad), jnp.float32),
        grid=grid,
        in_specs=[
            pl.BlockSpec((2, tb), lambda i: (0, i)),     # x: tiled over batch
            pl.BlockSpec((LP, 128), lambda i: (0, 0)),   # w1: VMEM resident
            pl.BlockSpec((LP, 128), lambda i: (0, 0)),   # b1: VMEM resident
            pl.BlockSpec((LP, 128), lambda i: (0, 0)),   # w2: VMEM resident
            pl.BlockSpec((1, 128), lambda i: (0, 0)),    # b2: VMEM resident
        ],
        out_specs=pl.BlockSpec((1, tb), lambda i: (0, i)),
        compiler_params=pltpu.CompilerParams(
            dimension_semantics=("parallel",)),          # v7x: shard over TCs
    )(xt, w1p, b1p, w2p, b2p)

    # Lane-dense (1, b_pad) row -> real [batch, 1] output.
    return out_padded[0, :batch].reshape(batch, 1)


def init_params(key, l):
    """Deterministic PyTorch-style init: U(-1/sqrt(fan_in), 1/sqrt(fan_in))."""
    def uniform(k, shape, fan_in):
        bound = 1.0 / jnp.sqrt(jnp.float32(fan_in))
        return jax.random.uniform(k, shape, jnp.float32, -bound, bound)

    k1, k2, k3, k4 = jax.random.split(key, 4)
    return dict(
        w1=uniform(k1, (2, l), 2),    # [in, out]
        b1=uniform(k2, (l,), 2),
        w2=uniform(k3, (l, 1), l),    # [in, out]
        b2=uniform(k4, (1,), l),
    )


def _reference_forward(x, p):
    """Plain-JAX reference for correctness checking."""
    h = jnp.maximum(x @ p["w1"] + p["b1"][None, :], 0.0)
    return jnp.tanh(h @ p["w2"] + p["b2"][None, :])


if __name__ == "__main__":
    key = jax.random.PRNGKey(0)
    k_params, k_x = jax.random.split(key)

    L = 32        # hidden width `l`
    BATCH = 8     # small batch of mountain-car states (position, velocity)

    params = init_params(k_params, L)
    x = jax.random.normal(k_x, (BATCH, 2), dtype=jnp.float32)

    out = linear_relu_forward(x, params)
    out = jax.block_until_ready(out)

    ref = _reference_forward(x, params)
    assert out.shape == (BATCH, 1)
    assert jnp.allclose(out, ref, atol=1e-5, rtol=1e-5), "mismatch vs reference"

    print("KERNEL_OK")
</pallas_src>

<mosaic_0001>
module attributes {stable_mosaic.version = 11 : i64} {
  func.func @_linear_relu_kernel(%arg0: i32, %arg1: memref<2x128xf32, #tpu.memory_space<vmem>>, %arg2: memref<32x128xf32, #tpu.memory_space<vmem>>, %arg3: memref<32x128xf32, #tpu.memory_space<vmem>>, %arg4: memref<32x128xf32, #tpu.memory_space<vmem>>, %arg5: memref<1x128xf32, #tpu.memory_space<vmem>>, %arg6: memref<1x128xf32, #tpu.memory_space<vmem>>) attributes {dimension_semantics = [#tpu.dimension_semantics<parallel>], iteration_bounds = array<i64: 1>, scalar_prefetch = 0 : i64, scratch_operands = 0 : i64, tpu.core_type = #tpu.core_type<tc>, window_params = [{transform_indices = @transform_0, window_bounds = array<i64: 2, 128>}, {pipeline_mode = #tpu.pipeline_mode<synchronous>, transform_indices = @transform_1, window_bounds = array<i64: 32, 128>}, {pipeline_mode = #tpu.pipeline_mode<synchronous>, transform_indices = @transform_2, window_bounds = array<i64: 32, 128>}, {pipeline_mode = #tpu.pipeline_mode<synchronous>, transform_indices = @transform_3, window_bounds = array<i64: 32, 128>}, {pipeline_mode = #tpu.pipeline_mode<synchronous>, transform_indices = @transform_4, window_bounds = array<i64: 1, 128>}, {transform_indices = @transform_5, window_bounds = array<i64: 1, 128>}]} {
    %c0 = arith.constant 0 : index
    %c0_0 = arith.constant 0 : index
    %0 = vector.load %arg1[%c0, %c0_0] : memref<2x128xf32, #tpu.memory_space<vmem>>, vector<1x128xf32>
    %c1 = arith.constant 1 : index
    %c0_1 = arith.constant 0 : index
    %1 = vector.load %arg1[%c1, %c0_1] : memref<2x128xf32, #tpu.memory_space<vmem>>, vector<1x128xf32>
    %c0_2 = arith.constant 0 : index
    %c0_3 = arith.constant 0 : index
    %2 = vector.load %arg2[%c0_2, %c0_3] : memref<32x128xf32, #tpu.memory_space<vmem>>, vector<32x1xf32>
    %3 = vector.broadcast %2 : vector<32x1xf32> to vector<32x128xf32>
    %4 = vector.broadcast %0 : vector<1x128xf32> to vector<32x128xf32>
    %5 = arith.mulf %3, %4 : vector<32x128xf32>
    %c0_4 = arith.constant 0 : index
    %c1_5 = arith.constant 1 : index
    %6 = vector.load %arg2[%c0_4, %c1_5] : memref<32x128xf32, #tpu.memory_space<vmem>>, vector<32x1xf32>
    %7 = vector.broadcast %6 : vector<32x1xf32> to vector<32x128xf32>
    %8 = vector.broadcast %1 : vector<1x128xf32> to vector<32x128xf32>
    %9 = arith.mulf %7, %8 : vector<32x128xf32>
    %10 = arith.addf %5, %9 : vector<32x128xf32>
    %c0_6 = arith.constant 0 : index
    %c0_7 = arith.constant 0 : index
    %11 = vector.load %arg3[%c0_6, %c0_7] : memref<32x128xf32, #tpu.memory_space<vmem>>, vector<32x1xf32>
    %12 = vector.broadcast %11 : vector<32x1xf32> to vector<32x128xf32>
    %13 = arith.addf %10, %12 : vector<32x128xf32>
    %cst = arith.constant 0.000000e+00 : f32
    %14 = vector.broadcast %cst : f32 to vector<32x128xf32>
    %15 = arith.maximumf %13, %14 : vector<32x128xf32>
    %c0_8 = arith.constant 0 : index
    %c0_9 = arith.constant 0 : index
    %16 = vector.load %arg4[%c0_8, %c0_9] : memref<32x128xf32, #tpu.memory_space<vmem>>, vector<32x1xf32>
    %17 = vector.broadcast %16 : vector<32x1xf32> to vector<32x128xf32>
    %18 = arith.mulf %15, %17 : vector<32x128xf32>
    %cst_10 = arith.constant dense<0.000000e+00> : vector<128xf32>
    %19 = vector.multi_reduction <add>, %18, %cst_10 [0] : vector<32x128xf32> to vector<128xf32>
    %20 = vector.shape_cast %19 : vector<128xf32> to vector<1x128xf32>
    %c0_11 = arith.constant 0 : index
    %c0_12 = arith.constant 0 : index
    %21 = vector.load %arg5[%c0_11, %c0_12] : memref<1x128xf32, #tpu.memory_space<vmem>>, vector<1x1xf32>
    %22 = vector.broadcast %21 : vector<1x1xf32> to vector<1x128xf32>
    %23 = arith.addf %20, %22 : vector<1x128xf32>
    %24 = math.tanh %23 : vector<1x128xf32>
    %c0_13 = arith.constant 0 : index
    %c0_14 = arith.constant 0 : index
    %25 = vector.load %arg6[%c0_13, %c0_14] : memref<1x128xf32, #tpu.memory_space<vmem>>, vector<1x128xf32>
    tpu.vector_store %arg6[%c0_13, %c0_14], %24 {strides = array<i32>} : memref<1x128xf32, #tpu.memory_space<vmem>>, vector<1x128xf32>,
    return
  }
  func.func @transform_0(%arg0: i32) -> (i32, i32) {
    %c0_i32 = arith.constant 0 : i32
    %c0_i32_0 = arith.constant 0 : i32
    return %c0_i32, %arg0 : i32, i32
  }
  func.func @transform_1(%arg0: i32) -> (i32, i32) {
    %c0_i32 = arith.constant 0 : i32
    %c0_i32_0 = arith.constant 0 : i32
    %c0_i32_1 = arith.constant 0 : i32
    return %c0_i32, %c0_i32_0 : i32, i32
  }
  func.func @transform_2(%arg0: i32) -> (i32, i32) {
    %c0_i32 = arith.constant 0 : i32
    %c0_i32_0 = arith.constant 0 : i32
    %c0_i32_1 = arith.constant 0 : i32
    return %c0_i32, %c0_i32_0 : i32, i32
  }
  func.func @transform_3(%arg0: i32) -> (i32, i32) {
    %c0_i32 = arith.constant 0 : i32
    %c0_i32_0 = arith.constant 0 : i32
    %c0_i32_1 = arith.constant 0 : i32
    return %c0_i32, %c0_i32_0 : i32, i32
  }
  func.func @transform_4(%arg0: i32) -> (i32, i32) {
    %c0_i32 = arith.constant 0 : i32
    %c0_i32_0 = arith.constant 0 : i32
    %c0_i32_1 = arith.constant 0 : i32
    return %c0_i32, %c0_i32_0 : i32, i32
  }
  func.func @transform_5(%arg0: i32) -> (i32, i32) {
    %c0_i32 = arith.constant 0 : i32
    %c0_i32_0 = arith.constant 0 : i32
    return %c0_i32, %arg0 : i32, i32
  }
}

</mosaic_0001>

<llo_original>
// kernel: tpu_custom_call.1
$region0: #{tpu_custom_call.1}
  #allocation0 [shape = 'u32[]', space=smem, size = 0x4, offset = 0x4, fixed_abs, tag = 'smem constant byte address 0x4 - core index']
  #allocation1 [shape = 'u32[144,128]{1,0:T(1,128)}', space=vmem, size = 0x12000, scoped, tag = 'internal scratch']
  %s0 = inlined_call_operand.hbm [shape: f32[2,128], index: 0, kind: input, shape index: {}]
  %s1 = inlined_call_operand.hbm [shape: f32[32,128], index: 1, kind: input, shape index: {}]
  %s2 = inlined_call_operand.hbm [shape: f32[32,128], index: 2, kind: input, shape index: {}]
  %s3 = inlined_call_operand.hbm [shape: f32[32,128], index: 3, kind: input, shape index: {}]
  %s4 = inlined_call_operand.vmem [shape: f32[1,128], index: 4, kind: input, shape index: {}]
  %s5 = inlined_call_operand.hbm [shape: f32[1,128], index: 5, kind: output, shape index: {}]
  %s6 = sld [smem:[#allocation0]]
  $region46: #{tpu_custom_call.1} parent=0
    _
  %s8 = ssub.s32 1, %s6
  %s9 = scalar_select 0, %s8, %s6
  $region1: #{tpu_custom_call.1} parent=0
    #allocation2 [shape = 'u8[1024]{0}', space=vmem, size = 0x400, scoped, tag = 'input window, operand 0, single buffered']
    #allocation3 [shape = 's32[1]{0}', space=sflag, size = 0x4, scoped, tag = 'scoped memory for tpu_custom_call.1']
    #allocation4 [shape = 's32[1]{0}', space=sflag, size = 0x4, scoped, tag = 'scoped memory for tpu_custom_call.1']
    #allocation5 [shape = 'u8[16384]{0}', space=vmem, size = 0x4000, scoped, tag = 'input window, operand 1, single buffered']
    #allocation6 [shape = 's32[1]{0}', space=sflag, size = 0x4, scoped, tag = 'scoped memory for tpu_custom_call.1']
    #allocation7 [shape = 'u8[16384]{0}', space=vmem, size = 0x4000, scoped, tag = 'input window, operand 2, single buffered']
    #allocation8 [shape = 'u8[16384]{0}', space=vmem, size = 0x4000, scoped, tag = 'input window, operand 3, single buffered']
    #allocation9 [shape = 's32[1]{0}', space=sflag, size = 0x4, scoped, tag = 'scoped memory for tpu_custom_call.1']
    #allocation10 [shape = 'u8[512]{0}', space=vmem, size = 0x400, scoped, tag = 'output window, operand 0, single buffered']
    %10 = vsyncpa [#allocation3], 0
    %11 = vsyncpa [#allocation6], 0
    %12 = vsyncpa [#allocation9], 0
    %13 = vsyncpa [#allocation4], 0
    // Predicated region
    $region2: #{tpu_custom_call.1} parent=1 // pred_check
      _
    $region3: #{tpu_custom_call.1} parent=1 // pred_check_branch
      %15 = sbr.rel (0) target = $region5
    $region4: #{tpu_custom_call.1} parent=1 // pred_region
      %s17 = ssub.s32 32, 32
      %18 = vsyncadd [#allocation3], %s17
      %s20 = sshll.u32 [#allocation2], 4
      %s21 = int_to_ptr.vmem [resolvable:$true] %s20
      %23 = dma.hbm_to_vmem [thread:$0]  %s0, 32, %s21, [#allocation3]
    $region5: #{tpu_custom_call.1} parent=1 // pred_fallthru
      _
    // Predicated region
    $region6: #{tpu_custom_call.1} parent=1 // pred_check
      _
    $region7: #{tpu_custom_call.1} parent=1 // pred_check_branch
      %25 = sbr.rel (0) target = $region9
    $region8: #{tpu_custom_call.1} parent=1 // pred_region
      %s27 = ssub.s32 512, 512
      %28 = vsyncadd [#allocation6], %s27
      %s29 = sshll.u32 [#allocation5], 4
      %s30 = int_to_ptr.vmem [resolvable:$true] %s29
      %35 = dma.hbm_to_vmem [thread:$0]  %s1, 512, %s30, [#allocation6], 128, 128, 8
    $region9: #{tpu_custom_call.1} parent=1 // pred_fallthru
      _
    // Predicated region
    $region10: #{tpu_custom_call.1} parent=1 // pred_check
      _
    $region11: #{tpu_custom_call.1} parent=1 // pred_check_branch
      %37 = sbr.rel (0) target = $region13
    $region12: #{tpu_custom_call.1} parent=1 // pred_region
      %s39 = ssub.s32 512, 512
      %40 = vsyncadd [#allocation6], %s39
      %s41 = sshll.u32 [#allocation7], 4
      %s42 = int_to_ptr.vmem [resolvable:$true] %s41
      %47 = dma.hbm_to_vmem [thread:$0]  %s2, 512, %s42, [#allocation6], 128, 128, 8
    $region13: #{tpu_custom_call.1} parent=1 // pred_fallthru
      _
    // Predicated region
    $region14: #{tpu_custom_call.1} parent=1 // pred_check
      _
    $region15: #{tpu_custom_call.1} parent=1 // pred_check_branch
      %49 = sbr.rel (0) target = $region17
    $region16: #{tpu_custom_call.1} parent=1 // pred_region
      %s51 = ssub.s32 512, 512
      %52 = vsyncadd [#allocation9], %s51
      %s53 = sshll.u32 [#allocation8], 4
      %s54 = int_to_ptr.vmem [resolvable:$true] %s53
      %59 = dma.hbm_to_vmem [thread:$0]  %s3, 512, %s54, [#allocation9], 128, 128, 8
    $region17: #{tpu_custom_call.1} parent=1 // pred_fallthru
      _
    // Predicated region
    $region18: #{tpu_custom_call.1} parent=1 // pred_check
      _
    $region19: #{tpu_custom_call.1} parent=1 // pred_check_branch
      %61 = sbr.rel (0) target = $region21
    $region20: #{tpu_custom_call.1} parent=1 // pred_region
      _
    $region21: #{tpu_custom_call.1} parent=1 // pred_fallthru
      _
    // Predicated region
    $region22: #{tpu_custom_call.1} parent=1 // pred_check
      _
    $region23: #{tpu_custom_call.1} parent=1 // pred_check_branch
      %63 = sbr.rel (0) target = $region25
    $region24: #{tpu_custom_call.1} parent=1 // pred_region
      %64 = dma.done [#allocation3], 32
    $region25: #{tpu_custom_call.1} parent=1 // pred_fallthru
      _
    // Predicated region
    $region26: #{tpu_custom_call.1} parent=1 // pred_check
      _
    $region27: #{tpu_custom_call.1} parent=1 // pred_check_branch
      %66 = sbr.rel (0) target = $region29
    $region28: #{tpu_custom_call.1} parent=1 // pred_region
      %67 = dma.done [#allocation6], 512
    $region29: #{tpu_custom_call.1} parent=1 // pred_fallthru
      _
    // Predicated region
    $region30: #{tpu_custom_call.1} parent=1 // pred_check
      _
    $region31: #{tpu_custom_call.1} parent=1 // pred_check_branch
      %69 = sbr.rel (0) target = $region33
    $region32: #{tpu_custom_call.1} parent=1 // pred_region
      %70 = dma.done [#allocation6], 512
    $region33: #{tpu_custom_call.1} parent=1 // pred_fallthru
      _
    // Predicated region
    $region34: #{tpu_custom_call.1} parent=1 // pred_check
      _
    $region35: #{tpu_custom_call.1} parent=1 // pred_check_branch
      %72 = sbr.rel (0) target = $region37
    $region36: #{tpu_custom_call.1} parent=1 // pred_region
      %73 = dma.done [#allocation9], 512
    $region37: #{tpu_custom_call.1} parent=1 // pred_fallthru
      _
    %v74 = vld [vmem:[#allocation2] sm:$0x1]
    %v75 = vld [vmem:[#allocation2 + $0x1] sm:$0x1]
    %v76 = vld [vmem:[#allocation5] sm:$0xff]
    %v77 = vld [vmem:[#allocation5 + $0x8] sm:$0xff]
    %v78 = vld [vmem:[#allocation5 + $0x10] sm:$0xff]
    %v79 = vld [vmem:[#allocation5 + $0x18] sm:$0xff]
    %81 = vset.pattern.permute.xlu0 0
    %82 = vperm.xlu0 %81, %v76
    %v83 = vpop.permute.xlu0 %82
    %86 = vset.pattern.permute.xlu0 0
    %87 = vperm.xlu0 %86, %v77
    %v88 = vpop.permute.xlu0 %87
    %91 = vset.pattern.permute.xlu0 0
    %92 = vperm.xlu0 %91, %v78
    %v93 = vpop.permute.xlu0 %92
    %96 = vset.pattern.permute.xlu0 0
    %97 = vperm.xlu0 %96, %v79
    %v98 = vpop.permute.xlu0 %97
    %v100 = vlaneseq
    %v101 = vshrl.u32 %v100, 7
    %v102 = vsub.s32 0, %v101
    %v103 = vrot.slane %v74, %v102
    %v104 = vmul.f32 %v83, %v103
    %v105 = vmul.f32 %v88, %v103
    %v106 = vmul.f32 %v93, %v103
    %v107 = vmul.f32 %v98, %v103
    %108 = vset.pattern.permute.xlu0 1
    %109 = vperm.xlu0 %108, %v76
    %v110 = vpop.permute.xlu0 %109
    %112 = vset.pattern.permute.xlu0 1
    %113 = vperm.xlu0 %112, %v77
    %v114 = vpop.permute.xlu0 %113
    %116 = vset.pattern.permute.xlu0 1
    %117 = vperm.xlu0 %116, %v78
    %v118 = vpop.permute.xlu0 %117
    %120 = vset.pattern.permute.xlu0 1
    %121 = vperm.xlu0 %120, %v79
    %v122 = vpop.permute.xlu0 %121
    %v124 = vlaneseq
    %v125 = vshrl.u32 %v124, 7
    %v126 = vsub.s32 0, %v125
    %v127 = vrot.slane %v75, %v126
    %v128 = vmul.f32 %v110, %v127
    %v129 = vmul.f32 %v114, %v127
    %v130 = vmul.f32 %v118, %v127
    %v131 = vmul.f32 %v122, %v127
    %v132 = vadd.f32 %v104, %v128
    %v133 = vadd.f32 %v105, %v129
    %v134 = vadd.f32 %v106, %v130
    %v135 = vadd.f32 %v107, %v131
    %v136 = vld [vmem:[#allocation7] sm:$0xff]
    %v137 = vld [vmem:[#allocation7 + $0x8] sm:$0xff]
    %v138 = vld [vmem:[#allocation7 + $0x10] sm:$0xff]
    %v139 = vld [vmem:[#allocation7 + $0x18] sm:$0xff]
    %141 = vset.pattern.permute.xlu0 0
    %142 = vperm.xlu0 %141, %v136
    %v143 = vpop.permute.xlu0 %142
    %146 = vset.pattern.permute.xlu0 0
    %147 = vperm.xlu0 %146, %v137
    %v148 = vpop.permute.xlu0 %147
    %151 = vset.pattern.permute.xlu0 0
    %152 = vperm.xlu0 %151, %v138
    %v153 = vpop.permute.xlu0 %152
    %156 = vset.pattern.permute.xlu0 0
    %157 = vperm.xlu0 %156, %v139
    %v158 = vpop.permute.xlu0 %157
    %v160 = vadd.f32 %v132, %v143
    %v161 = vadd.f32 %v133, %v148
    %v162 = vadd.f32 %v134, %v153
    %v163 = vadd.f32 %v135, %v158
    %v164 = vmax.f32 %v160, 0.0
    %v165 = vmax.f32 %v161, 0.0
    %v166 = vmax.f32 %v162, 0.0
    %v167 = vmax.f32 %v163, 0.0
    %v168 = vld [vmem:[#allocation8] sm:$0xff]
    %v169 = vld [vmem:[#allocation8 + $0x8] sm:$0xff]
    %v170 = vld [vmem:[#allocation8 + $0x10] sm:$0xff]
    %v171 = vld [vmem:[#allocation8 + $0x18] sm:$0xff]
    %173 = vset.pattern.permute.xlu0 0
    %174 = vperm.xlu0 %173, %v168
    %v175 = vpop.permute.xlu0 %174
    %178 = vset.pattern.permute.xlu0 0
    %179 = vperm.xlu0 %178, %v169
    %v180 = vpop.permute.xlu0 %179
    %183 = vset.pattern.permute.xlu0 0
    %184 = vperm.xlu0 %183, %v170
    %v185 = vpop.permute.xlu0 %184
    %188 = vset.pattern.permute.xlu0 0
    %189 = vperm.xlu0 %188, %v171
    %v190 = vpop.permute.xlu0 %189
    %v192 = vmul.f32 %v164, %v175
    %v193 = vmul.f32 %v165, %v180
    %v194 = vmul.f32 %v166, %v185
    %v195 = vmul.f32 %v167, %v190
    %v196 = vadd.f32 %v192, %v193
    %v197 = vadd.f32 %v196, %v194
    %v198 = vadd.f32 %v197, %v195
    %v199 = vrot.slane %v198, 4
    %v200 = vadd.f32 %v198, %v199
    %v201 = vrot.slane %v200, 2
    %v202 = vadd.f32 %v200, %v201
    %v203 = vrot.slane %v202, 1
    %v204 = vadd.f32 %v202, %v203
    %v205 = vld [vmem:[%s4] sm:$0x1]
    %207 = vset.pattern.permute.xlu0 0
    %208 = vperm.xlu0 %207, %v205
    %v209 = vpop.permute.xlu0 %208
    %v211 = vlaneseq
    %v212 = vshrl.u32 %v211, 7
    %v213 = vsub.s32 0, %v212
    %v214 = vrot.slane %v209, %v213
    %v215 = vadd.f32 %v204, %v214
    %v216 = vtanh.pop %v215
    %217 = vst [vmem:[#allocation10] sm:$0x1] %v216
    // Predicated region
    $region38: #{tpu_custom_call.1} parent=1 // pred_check
      _
    $region39: #{tpu_custom_call.1} parent=1 // pred_check_branch
      %219 = sbr.rel (0) target = $region41
    $region40: #{tpu_custom_call.1} parent=1 // pred_region
      %s221 = ssub.s32 16, 16
      %222 = vsyncadd [#allocation4], %s221
      %s224 = sshll.u32 [#allocation10], 4
      %s225 = int_to_ptr.vmem [resolvable:$true] %s224
      %227 = dma.vmem_to_hbm [thread:$0]  %s225, 16, %s5, [#allocation4]
    $region41: #{tpu_custom_call.1} parent=1 // pred_fallthru
      _
    // Predicated region
    $region42: #{tpu_custom_call.1} parent=1 // pred_check
      _
    $region43: #{tpu_custom_call.1} parent=1 // pred_check_branch
      %229 = sbr.rel (0) target = $region45
    $region44: #{tpu_custom_call.1} parent=1 // pred_region
      %230 = dma.done [#allocation4], 16
    $region45: #{tpu_custom_call.1} parent=1 // pred_fallthru
      _
    %231 = vsyncpa [#allocation3], 1
    %232 = vsyncpa [#allocation6], 1
    %233 = vsyncpa [#allocation9], 1
    %234 = vsyncpa [#allocation4], 1

</llo_original>
